<compile_context>
chip_gen: v7x
topology: tpu7x:2x2x1
jax: 0.10.0
libtpu: 0.0.40
codegen_flags: <defaults>
</compile_context>

<pallas_src>
import jax
import jax.numpy as jnp
from jax.experimental import pallas as pl
from jax.experimental.pallas import tpu as pltpu


def _pos_enc_kernel(x_ref, pos_ref, o_ref):
    # x_ref / o_ref: (TB, TN) tile; pos_ref: (1, TN) row broadcast over sublanes.
    o_ref[...] = x_ref[...] + pos_ref[...]


def _round_down(v, m):
    return (v // m) * m


def _round_up(v, m):
    return ((v + m - 1) // m) * m


_TARGET_BLOCK_BYTES = 8 * 1024 * 1024   # ~8 MiB tiles (sweet spot v6e/v7x, fine on v5e)
_ROW_SPLIT_BYTES = 2 * 1024 * 1024      # tile the lane dim too when one row exceeds this
_VMEM_LIMIT_BYTES = 48 * 1024 * 1024    # <= ~48 MiB keeps v7x's 64 MiB VMEM safe


def positional_encoder_learnt(x, pos, *, donate_input=False, xla_fallback_bytes=0):
    """x: (..., S, D), pos: (max_seq_len, D) -> (..., S, D) in promoted dtype."""
    *lead, S, D = x.shape
    B = 1
    for d in lead:
        B *= d
    N = S * D

    # Match torch type-promotion semantics (e.g. bf16 x + f32 pos -> f32).
    out_dtype = jnp.promote_types(x.dtype, pos.dtype)
    itemsize = jnp.dtype(out_dtype).itemsize

    # Optional small-input bypass: below ~1 MiB a fused XLA add beats kernel
    # launch + per-step overhead. Default threshold 0 keeps the Pallas path on.
    if B * N * itemsize <= xla_fallback_bytes:
        return x.astype(out_dtype) + pos[:S, :].astype(out_dtype)

    # Lane-dense 2D views (layout-only reshape for contiguous row-major x).
    # TODO(synk): if S*D is not a multiple of 128 the row-tail stores are masked
    # (vst.msk); padding N or a (B*S, D) flattening would restore lane density.
    x2 = x.astype(out_dtype).reshape(B, N)
    pos2 = pos[:S, :].astype(out_dtype).reshape(1, N)

    # dtype-aware sublane tile: 8 for f32, 16 for bf16, 32 for int8/fp8.
    sublane = max(8, 32 // itemsize)
    row_bytes = N * itemsize

    if row_bytes <= _ROW_SPLIT_BYTES:
        # 1-D tiling over rows; each block DMA is fully contiguous in HBM.
        tn = N
        if B <= sublane:
            tb = B                                   # full extent -> always legal
        else:
            rows = max(sublane,
                       _round_down(_TARGET_BLOCK_BYTES // row_bytes, sublane))
            tb = min(rows, B)
            # v7x megacore: guarantee >= 2 steps on the parallel row axis so
            # both TensorCores stream data (no-op on single-TC v5e/v6e).
            if -(-B // tb) == 1:
                tb = _round_up(-(-B // 2), sublane)
    else:
        # Huge rows: also tile the lane dimension so a block never exceeds the
        # target (a tb=8-over-full-row fallback would VMEM-OOM, fatally on v7x).
        tb = B if B < sublane else sublane
        tn_cap = max(1, _TARGET_BLOCK_BYTES // (tb * itemsize))
        if tn_cap >= N:
            tn = N
        else:
            tn = min(N, max(128, _round_down(tn_cap, 128)))

    grid = (pl.cdiv(B, tb), pl.cdiv(N, tn))

    cost = pl.CostEstimate(
        flops=B * N,
        transcendentals=0,
        bytes_accessed=2 * B * N * itemsize + N * itemsize,
    )

    # Optional in-place update over x. Only safe when the caller discards x
    # (eager-mode buffer donation invalidates the input), so off by default.
    io_aliases = {0: 0} if donate_input else {}

    out2 = pl.pallas_call(
        _pos_enc_kernel,
        out_shape=jax.ShapeDtypeStruct((B, N), out_dtype),
        grid_spec=pltpu.PrefetchScalarGridSpec(
            num_scalar_prefetch=0,
            grid=grid,
            in_specs=[
                pl.BlockSpec((tb, tn), lambda i, j: (i, j)),   # x tile
                pl.BlockSpec((1, tn), lambda i, j: (0, j)),    # pos row (resident)
            ],
            out_specs=pl.BlockSpec((tb, tn), lambda i, j: (i, j)),
        ),
        compiler_params=pltpu.CompilerParams(
            dimension_semantics=("parallel", "parallel"),
            vmem_limit_bytes=_VMEM_LIMIT_BYTES,
        ),
        cost_estimate=cost,
        input_output_aliases=io_aliases,
    )(x2, pos2)

    return out2.reshape((*lead, S, D))


# TODO(synk): for end-to-end speed this broadcast-add should be fused into the
# producing/consuming kernel (embedding epilogue or QKV prologue); standalone it
# is capped at 1R+1W of the activation at HBM roofline.


if __name__ == "__main__":
    # Shapes consistent with the module: d_model=32, max_seq_len=16, seq=8.
    d_model = 32
    max_seq_len = 16
    B, S = 2, 8

    key = jax.random.PRNGKey(0)
    kx, kp, kx2, kx3 = jax.random.split(key, 4)
    x = jax.random.normal(kx, (B, S, d_model), dtype=jnp.float32)
    # nn.Parameter(torch.zeros(...)) in __init__; use non-trivial values so the
    # add is observable.
    pos = jax.random.normal(kp, (max_seq_len, d_model), dtype=jnp.float32)

    out = jax.block_until_ready(positional_encoder_learnt(x, pos))
    ref = x + pos[:S, :]
    assert out.shape == (B, S, d_model)
    assert out.dtype == jnp.float32
    assert jnp.allclose(out, ref, atol=1e-6, rtol=1e-6)

    # Arbitrary leading dims, like the PyTorch module allows.
    x4 = jax.random.normal(kx2, (2, 3, S, d_model), dtype=jnp.float32)
    out4 = jax.block_until_ready(positional_encoder_learnt(x4, pos))
    assert out4.shape == x4.shape
    assert jnp.allclose(out4, x4 + pos[:S, :], atol=1e-6, rtol=1e-6)

    # Larger batch exercises the multi-row-block (2-TensorCore) grid path.
    xb = jax.random.normal(kx3, (64, S, d_model), dtype=jnp.float32)
    outb = jax.block_until_ready(positional_encoder_learnt(xb, pos))
    assert jnp.allclose(outb, xb + pos[:S, :], atol=1e-6, rtol=1e-6)

    # bf16 activations + f32 params follow torch promotion (compute/return f32).
    xh = xb.astype(jnp.bfloat16)
    outh = jax.block_until_ready(positional_encoder_learnt(xh, pos))
    assert outh.dtype == jnp.float32
    assert jnp.allclose(outh, xh.astype(jnp.float32) + pos[:S, :],
                        atol=1e-6, rtol=1e-6)

    print("KERNEL_OK")
</pallas_src>

<mosaic_0001>
module attributes {stable_mosaic.version = 11 : i64} {
  func.func @_pos_enc_kernel(%arg0: i32, %arg1: i32, %arg2: memref<2x256xf32, #tpu.memory_space<vmem>>, %arg3: memref<1x256xf32, #tpu.memory_space<vmem>>, %arg4: memref<2x256xf32, #tpu.memory_space<vmem>>) attributes {dimension_semantics = [#tpu.dimension_semantics<parallel>, #tpu.dimension_semantics<parallel>], iteration_bounds = array<i64: 1, 1>, scalar_prefetch = 0 : i64, scratch_operands = 0 : i64, tpu.core_type = #tpu.core_type<tc>, window_params = [{transform_indices = @transform_0, window_bounds = array<i64: 2, 256>}, {transform_indices = @transform_1, window_bounds = array<i64: 1, 256>}, {transform_indices = @transform_2, window_bounds = array<i64: 2, 256>}]} {
    %c0 = arith.constant 0 : index
    %c0_0 = arith.constant 0 : index
    %0 = vector.load %arg2[%c0, %c0_0] : memref<2x256xf32, #tpu.memory_space<vmem>>, vector<2x256xf32>
    %c0_1 = arith.constant 0 : index
    %c0_2 = arith.constant 0 : index
    %1 = vector.load %arg3[%c0_1, %c0_2] : memref<1x256xf32, #tpu.memory_space<vmem>>, vector<1x256xf32>
    %2 = vector.broadcast %1 : vector<1x256xf32> to vector<2x256xf32>
    %3 = arith.addf %0, %2 : vector<2x256xf32>
    %c0_3 = arith.constant 0 : index
    %c0_4 = arith.constant 0 : index
    %4 = vector.load %arg4[%c0_3, %c0_4] : memref<2x256xf32, #tpu.memory_space<vmem>>, vector<2x256xf32>
    tpu.vector_store %arg4[%c0_3, %c0_4], %3 {strides = array<i32>} : memref<2x256xf32, #tpu.memory_space<vmem>>, vector<2x256xf32>,
    return
  }
  func.func @transform_0(%arg0: i32, %arg1: i32) -> (i32, i32) {
    %c0_i32 = arith.constant 0 : i32
    return %arg0, %arg1 : i32, i32
  }
  func.func @transform_1(%arg0: i32, %arg1: i32) -> (i32, i32) {
    %c0_i32 = arith.constant 0 : i32
    %c0_i32_0 = arith.constant 0 : i32
    return %c0_i32, %arg1 : i32, i32
  }
  func.func @transform_2(%arg0: i32, %arg1: i32) -> (i32, i32) {
    %c0_i32 = arith.constant 0 : i32
    return %arg0, %arg1 : i32, i32
  }
}

</mosaic_0001>

<llo_original>
// kernel: tpu_custom_call.1
$region0: #{tpu_custom_call.1}
  #allocation0 [shape = 'u32[]', space=smem, size = 0x4, offset = 0x4, fixed_abs, tag = 'smem constant byte address 0x4 - core index']
  #allocation1 [shape = 'u32[144,128]{1,0:T(1,128)}', space=vmem, size = 0x12000, scoped, tag = 'internal scratch']
  %s0 = inlined_call_operand.hbm [shape: f32[2,256], index: 0, kind: input, shape index: {}]
  %s1 = inlined_call_operand.vmem [shape: f32[1,256], index: 1, kind: input, shape index: {}]
  %s2 = inlined_call_operand.hbm [shape: f32[2,256], index: 2, kind: output, shape index: {}]
  %s3 = sld [smem:[#allocation0]]
  $region22: #{tpu_custom_call.1} parent=0
    _
  %s5 = ssub.s32 1, %s3
  %s6 = scalar_select 0, %s5, %s3
  $region1: #{tpu_custom_call.1} parent=0
    #allocation2 [shape = 'u8[2048]{0}', space=vmem, size = 0x800, scoped, tag = 'input window, operand 0, single buffered']
    #allocation3 [shape = 's32[1]{0}', space=sflag, size = 0x4, scoped, tag = 'scoped memory for tpu_custom_call.1']
    #allocation4 [shape = 's32[1]{0}', space=sflag, size = 0x4, scoped, tag = 'scoped memory for tpu_custom_call.1']
    #allocation5 [shape = 'u8[2048]{0}', space=vmem, size = 0x800, scoped, tag = 'output window, operand 0, single buffered']
    %7 = vsyncpa [#allocation3], 0
    %8 = vsyncpa [#allocation4], 0
    // Predicated region
    $region2: #{tpu_custom_call.1} parent=1 // pred_check
      _
    $region3: #{tpu_custom_call.1} parent=1 // pred_check_branch
      %10 = sbr.rel (0) target = $region5
    $region4: #{tpu_custom_call.1} parent=1 // pred_region
      %s12 = ssub.s32 64, 64
      %13 = vsyncadd [#allocation3], %s12
      %s15 = sshll.u32 [#allocation2], 4
      %s16 = int_to_ptr.vmem [resolvable:$true] %s15
      %18 = dma.hbm_to_vmem [thread:$0]  %s0, 64, %s16, [#allocation3]
    $region5: #{tpu_custom_call.1} parent=1 // pred_fallthru
      _
    // Predicated region
    $region6: #{tpu_custom_call.1} parent=1 // pred_check
      _
    $region7: #{tpu_custom_call.1} parent=1 // pred_check_branch
      %20 = sbr.rel (0) target = $region9
    $region8: #{tpu_custom_call.1} parent=1 // pred_region
      _
    $region9: #{tpu_custom_call.1} parent=1 // pred_fallthru
      _
    // Predicated region
    $region10: #{tpu_custom_call.1} parent=1 // pred_check
      _
    $region11: #{tpu_custom_call.1} parent=1 // pred_check_branch
      %22 = sbr.rel (0) target = $region13
    $region12: #{tpu_custom_call.1} parent=1 // pred_region
      %23 = dma.done [#allocation3], 64
    $region13: #{tpu_custom_call.1} parent=1 // pred_fallthru
      _
    %v24 = vld [vmem:[#allocation2] sm:$0xf]
    %v25 = vld [vmem:[%s1] sm:$0x3]
    %v27 = vlaneseq
    %v28 = vshrl.u32 %v27, 7
    %v29 = vsub.s32 0, %v28
    %v30 = vrot.slane %v25, %v29
    %v31 = vlaneseq
    %v32 = vshrl.u32 %v31, 7
    %v33 = vsub.s32 1, %v32
    %v34 = vrot.slane %v25, %v33
    %v35 = vcombine.low %v30, %v34
    %v37 = vunpack.c.l.s4 1983009808
    %v38 = vunpack.c.0.s8 %v37
    %v39 = vlaneseq
    %v40 = vshrl.u32 %v39, 7
    %v41 = vsub.s32 %v38, %v40
    %v42 = vrot.slane %v35, %v41
    %v44 = vadd.f32 %v24, %v42
    %45 = vst [vmem:[#allocation5] sm:$0xf] %v44
    // Predicated region
    $region14: #{tpu_custom_call.1} parent=1 // pred_check
      _
    $region15: #{tpu_custom_call.1} parent=1 // pred_check_branch
      %47 = sbr.rel (0) target = $region17
    $region16: #{tpu_custom_call.1} parent=1 // pred_region
      %s49 = ssub.s32 64, 64
      %50 = vsyncadd [#allocation4], %s49
      %s52 = sshll.u32 [#allocation5], 4
      %s53 = int_to_ptr.vmem [resolvable:$true] %s52
      %55 = dma.vmem_to_hbm [thread:$0]  %s53, 64, %s2, [#allocation4]
    $region17: #{tpu_custom_call.1} parent=1 // pred_fallthru
      _
    // Predicated region
    $region18: #{tpu_custom_call.1} parent=1 // pred_check
      _
    $region19: #{tpu_custom_call.1} parent=1 // pred_check_branch
      %57 = sbr.rel (0) target = $region21
    $region20: #{tpu_custom_call.1} parent=1 // pred_region
      %58 = dma.done [#allocation4], 64
    $region21: #{tpu_custom_call.1} parent=1 // pred_fallthru
      _
    %59 = vsyncpa [#allocation3], 1
    %60 = vsyncpa [#allocation4], 1

</llo_original>
